<compile_context>
chip_gen: v6e
topology: v6e:2x2x1
jax: 0.10.0
libtpu: 0.0.40
codegen_flags: <defaults>
</compile_context>

<pallas_src>
import jax
import jax.numpy as jnp
from jax.experimental import pallas as pl
from jax.experimental.pallas import tpu as pltpu


_FAST_PATH_BYTES = 1 << 20  # below ~1 MiB, plain fused XLA elementwise wins


def _skip_kernel(w_ref, x_ref, xs_ref, o_ref):
    # w_ref: SMEM f32 scalar (shape (1,)); x_ref/xs_ref/o_ref: VMEM tiles.
    w = w_ref[0]
    xv = x_ref[...]
    sv = xs_ref[...]
    if xv.dtype == jnp.float32:
        o_ref[...] = xv + sv * w
    else:
        # Native low-precision FMA: v6e/v7x VPUs are bf16-capable; on v5e the
        # compiler upcasts internally. Scalar cast is one op per tile.
        o_ref[...] = xv + sv * w.astype(xv.dtype)


def _round_up(a, b):
    return ((a + b - 1) // b) * b


def skip_forward(x, x_skip, skip_weight):
    """x, x_skip: same shape/dtype (e.g. NCHW). skip_weight: learned scalar (f32)."""
    assert x.shape == x_skip.shape and x.dtype == x_skip.dtype
    orig_shape = x.shape
    dtype = x.dtype
    total = x.size
    itemsize = jnp.dtype(dtype).itemsize

    # Largest lane width in {512, 256, 128} that divides total (None => ragged).
    lane = next((l for l in (512, 256, 128) if total % l == 0), None)

    # Fast path: tiny tensors (launch overhead dominates) or ragged sizes
    # (no pad/slice copies — XLA's fused elementwise FMA is at roofline here).
    if total * itemsize < _FAST_PATH_BYTES or lane is None:
        w = jnp.asarray(skip_weight, dtype=jnp.float32).astype(dtype)
        return x + x_skip * w

    # Kernel path: lane-dense slab via free contiguous reshape.
    xf = x.reshape(-1, lane)
    xsf = x_skip.reshape(-1, lane)
    rows = xf.shape[0]  # >= 512 given the 1 MiB fast-path threshold

    # ~4 MiB per operand tile (amortizes the ~0.35 us per-step overhead),
    # but always at least ~8 grid steps so both v7x TensorCores get work and
    # the pipeline double-buffers.
    target_tile_bytes = 4 * 1024 * 1024
    tile_rows_cap = max(8, target_tile_bytes // (lane * itemsize))
    tile_rows = min(tile_rows_cap, max(8, _round_up(pl.cdiv(rows, 8), 8)))
    grid = (pl.cdiv(rows, tile_rows),)  # Pallas masks the partial last block

    # Keep the learned scalar in f32 SMEM (matches a PyTorch f32 nn.Parameter).
    w = jnp.asarray(skip_weight, dtype=jnp.float32).reshape(1)

    out_flat = pl.pallas_call(
        _skip_kernel,
        out_shape=jax.ShapeDtypeStruct((rows, lane), dtype),
        grid_spec=pl.GridSpec(
            grid=grid,
            in_specs=[
                pl.BlockSpec(memory_space=pltpu.SMEM),               # skip_weight
                pl.BlockSpec((tile_rows, lane), lambda i: (i, 0)),   # x
                pl.BlockSpec((tile_rows, lane), lambda i: (i, 0)),   # x_skip
            ],
            out_specs=pl.BlockSpec((tile_rows, lane), lambda i: (i, 0)),
        ),
        compiler_params=pltpu.CompilerParams(
            dimension_semantics=("parallel",),
            # 3 operands x 2 buffers x ~4 MiB = ~24 MiB; 40 MiB leaves headroom
            # and stays under v7x's 64 MiB physical VMEM (v5e/v6e have 128 MiB).
            vmem_limit_bytes=40 << 20,
        ),
        cost_estimate=pl.CostEstimate(
            flops=2 * total,
            transcendentals=0,
            bytes_accessed=3 * total * itemsize,
        ),
        # NOTE: input_output_aliases={1: 0} would drop the extra HBM output
        # allocation when the caller never reuses x after this call; omitted
        # here because the tests (and the module's save_dict) read x again.
    )(w, xf, xsf)

    return out_flat.reshape(orig_shape)


if __name__ == "__main__":
    key = jax.random.PRNGKey(0)
    k1, k2, k3, k4 = jax.random.split(key, 4)

    # Deterministic parameter init matching nn.Parameter(torch.tensor(1.0)).
    skip_weight = jnp.float32(1.0)

    # --- main small NCHW case (tiny fast path: 8 KiB) ---
    x = jax.random.normal(k1, (2, 4, 16, 16), dtype=jnp.float32)
    x_skip = jax.random.normal(k2, (2, 4, 16, 16), dtype=jnp.float32)
    out = jax.block_until_ready(skip_forward(x, x_skip, skip_weight))
    ref = x + x_skip * skip_weight
    assert out.shape == x.shape
    assert jnp.allclose(out, ref, atol=1e-6, rtol=1e-6)

    # --- ragged size (fast path, no pad/slice copies) ---
    xr = jax.random.normal(k3, (3, 5, 7, 11), dtype=jnp.float32)
    xsr = jax.random.normal(k4, (3, 5, 7, 11), dtype=jnp.float32)
    outr = jax.block_until_ready(skip_forward(xr, xsr, jnp.float32(0.5)))
    refr = xr + xsr * jnp.float32(0.5)
    assert jnp.allclose(outr, refr, atol=1e-6, rtol=1e-6)

    # --- kernel path, f32, lane=512, multi-block grid (~8 steps) ---
    xb = jax.random.normal(k1, (8, 8, 96, 96), dtype=jnp.float32)   # 2.25 MiB
    xsb = jax.random.normal(k2, (8, 8, 96, 96), dtype=jnp.float32)
    outb = jax.block_until_ready(skip_forward(xb, xsb, jnp.float32(2.0)))
    refb = xb + xsb * jnp.float32(2.0)
    assert jnp.allclose(outb, refb, atol=1e-6, rtol=1e-6)

    # --- kernel path, f32, adaptive lane=256, masked partial last block ---
    xc = jax.random.normal(k3, (2050, 128), dtype=jnp.float32)      # total % 512 != 0
    xsc = jax.random.normal(k4, (2050, 128), dtype=jnp.float32)
    outc = jax.block_until_ready(skip_forward(xc, xsc, jnp.float32(1.5)))
    refc = xc + xsc * jnp.float32(1.5)
    assert jnp.allclose(outc, refc, atol=1e-6, rtol=1e-6)

    # --- kernel path, bf16 native FMA (v6e/v7x) ---
    xd = jax.random.normal(k1, (8, 16, 64, 64), dtype=jnp.bfloat16)  # 1 MiB
    xsd = jax.random.normal(k2, (8, 16, 64, 64), dtype=jnp.bfloat16)
    outd = jax.block_until_ready(skip_forward(xd, xsd, jnp.float32(0.25)))
    refd = xd + xsd * jnp.bfloat16(0.25)
    assert outd.dtype == jnp.bfloat16
    assert jnp.allclose(outd.astype(jnp.float32), refd.astype(jnp.float32),
                        atol=1e-2, rtol=1e-2)

    # TODO(synk): the PyTorch module also stashes self.save_dict (detached
    # inp / inp_skip / out) as a side effect; that is host-side bookkeeping,
    # not kernel compute, so it is omitted here.
    print("KERNEL_OK")
</pallas_src>

<mosaic_0001>
module attributes {stable_mosaic.version = 11 : i64} {
  func.func @_skip_kernel(%arg0: i32, %arg1: memref<1xf32, #tpu.memory_space<smem>>, %arg2: memref<144x512xf32, #tpu.memory_space<vmem>>, %arg3: memref<144x512xf32, #tpu.memory_space<vmem>>, %arg4: memref<144x512xf32, #tpu.memory_space<vmem>>) attributes {dimension_semantics = [#tpu.dimension_semantics<parallel>], iteration_bounds = array<i64: 8>, scalar_prefetch = 0 : i64, scratch_operands = 0 : i64, tpu.core_type = #tpu.core_type<tc>, window_params = [{transform_indices = @transform_0, window_bounds = array<i64: 1>}, {transform_indices = @transform_1, window_bounds = array<i64: 144, 512>}, {transform_indices = @transform_2, window_bounds = array<i64: 144, 512>}, {transform_indices = @transform_3, window_bounds = array<i64: 144, 512>}]} {
    %c0 = arith.constant 0 : index
    %0 = memref.load %arg1[%c0] : memref<1xf32, #tpu.memory_space<smem>>
    %c0_0 = arith.constant 0 : index
    %c0_1 = arith.constant 0 : index
    %1 = vector.load %arg2[%c0_0, %c0_1] : memref<144x512xf32, #tpu.memory_space<vmem>>, vector<144x512xf32>
    %c0_2 = arith.constant 0 : index
    %c0_3 = arith.constant 0 : index
    %2 = vector.load %arg3[%c0_2, %c0_3] : memref<144x512xf32, #tpu.memory_space<vmem>>, vector<144x512xf32>
    %3 = vector.broadcast %0 : f32 to vector<144x512xf32>
    %4 = arith.mulf %2, %3 : vector<144x512xf32>
    %5 = arith.addf %1, %4 : vector<144x512xf32>
    %c0_4 = arith.constant 0 : index
    %c0_5 = arith.constant 0 : index
    %6 = vector.load %arg4[%c0_4, %c0_5] : memref<144x512xf32, #tpu.memory_space<vmem>>, vector<144x512xf32>
    tpu.vector_store %arg4[%c0_4, %c0_5], %5 {strides = array<i32>} : memref<144x512xf32, #tpu.memory_space<vmem>>, vector<144x512xf32>,
    return
  }
  func.func @transform_0(%arg0: i32) -> i32 {
    %c0_i32 = arith.constant 0 : i32
    %c0_i32_0 = arith.constant 0 : i32
    return %c0_i32 : i32
  }
  func.func @transform_1(%arg0: i32) -> (i32, i32) {
    %c0_i32 = arith.constant 0 : i32
    %c0_i32_0 = arith.constant 0 : i32
    return %arg0, %c0_i32 : i32, i32
  }
  func.func @transform_2(%arg0: i32) -> (i32, i32) {
    %c0_i32 = arith.constant 0 : i32
    %c0_i32_0 = arith.constant 0 : i32
    return %arg0, %c0_i32 : i32, i32
  }
  func.func @transform_3(%arg0: i32) -> (i32, i32) {
    %c0_i32 = arith.constant 0 : i32
    %c0_i32_0 = arith.constant 0 : i32
    return %arg0, %c0_i32 : i32, i32
  }
}

</mosaic_0001>

<llo_original>
// kernel: tpu_custom_call.1
$region0: #{tpu_custom_call.1}
  #allocation0 [shape = 'u32[]', space=smem, size = 0x4, offset = 0x4, fixed_abs, tag = 'smem constant byte address 0x4 - core index']
  #allocation1 [shape = 'u32[144,128]{1,0:T(1,128)}', space=vmem, size = 0x12000, scoped, tag = 'internal scratch']
  #allocation2 [shape = 'f32[1]{0:T(128)S(6)}', space=smem, size = 0x200, scoped, tag = 'scoped memory for tpu_custom_call.1']
  %s0 = inlined_call_operand.<no memory space> [shape: f32[1], index: 0, kind: input, shape index: {}]
  %s1 = inlined_call_operand.hbm [shape: f32[1152,512], index: 1, kind: input, shape index: {}]
  %s2 = inlined_call_operand.hbm [shape: f32[1152,512], index: 2, kind: input, shape index: {}]
  %s3 = inlined_call_operand.hbm [shape: f32[1152,512], index: 3, kind: output, shape index: {}]
  %s4 = sld [smem:[#allocation0]]
  $region53: #{tpu_custom_call.1} parent=0
    _
  %s6 = ssub.s32 1, %s4
  %s7 = scalar_select 0, %s6, %s4
  %8 = sst [smem:[#allocation2]] %s0
  $region1: #{tpu_custom_call.1} parent=0
    #allocation3 [shape = 'u8[589824]{0}', space=vmem, size = 0x90000, scoped, tag = 'input window, operand 1']
    #allocation4 [shape = 's32[2]{0}', space=sflag, size = 0x8, scoped, tag = 'scoped memory for tpu_custom_call.1']
    #allocation5 [shape = 's32[2]{0}', space=sflag, size = 0x8, scoped, tag = 'scoped memory for tpu_custom_call.1']
    #allocation6 [shape = 'u8[589824]{0}', space=vmem, size = 0x90000, scoped, tag = 'input window, operand 2']
    #allocation7 [shape = 's32[2]{0}', space=sflag, size = 0x8, scoped, tag = 'scoped memory for tpu_custom_call.1']
    #allocation8 [shape = 'u8[589824]{0}', space=vmem, size = 0x90000, scoped, tag = 'output window, operand 0']
    %9 = vsyncpa [#allocation4], 0
    %s10 = scalar_lea.sflag [#allocation4], 1
    %11 = vsyncpa %s10, 0
    %12 = vsyncpa [#allocation7], 0
    %s13 = scalar_lea.sflag [#allocation7], 1
    %14 = vsyncpa %s13, 0
    %15 = vsyncpa [#allocation5], 0
    %s16 = scalar_lea.sflag [#allocation5], 1
    %17 = vsyncpa %s16, 0
    loop: start=0, step=1, limit=10
    $region2: #{tpu_custom_call.1} parent=1 // loop_pre_header
      _
    $region3: #{tpu_custom_call.1} parent=1 // loop_header
      %s19 = sphi 0, %s23
      %p20 = scmp.ge.s32.totalorder %s19, 10
      %s27 = sphi 0, %s27
      %s29 = sphi 0, %s27
      %s30 = sphi 0, %s29
      %s44 = sphi 0, %s30
      %s50 = sphi 0, %s52
      %s53 = sphi 0, %s50
      %s54 = sphi 0, %s53
      %s70 = sphi 0, %s54
      %s76 = sphi 0, %s78
      %s79 = sphi 0, %s76
      %s80 = sphi 0, %s79
      %s96 = sphi 0, %s80
      %s102 = sphi 0, %s104
      %s105 = sphi 0, %s102
      %s106 = sphi 0, %s105
      %s122 = sphi 0, %s106
    $region4: #{tpu_custom_call.1} parent=1 // loop_header_branch
      %22 = sbr.rel (%p20) target = $region8
    $region5: #{tpu_custom_call.1} parent=1 // loop_body
      %s24 = ssub.s32 %s19, 1
      %s25 = ssub.s32 %s19, 2
      %s26 = sadd.s32 %s19, 1
      %s28 = sadd.s32 %s27, 1
      %p31 = scmp.eq.s32.totalorder %s19, 7
      %p32 = scmp.ne.s32.totalorder %s27, %s29
      %p33 = scmp.eq.s32.totalorder %s19, 0
      %p34 = por %p32, %p33
      %p35 = scmp.ne.s32.totalorder %s27, %s29
      %p36 = scmp.eq.s32.totalorder %s24, 7
      %p37 = por %p35, %p36
      %p38 = scmp.ne.s32.totalorder %s29, %s30
      %p39 = scmp.eq.s32.totalorder %s24, 0
      %p40 = por %p38, %p39
      %p41 = scmp.ne.s32.totalorder %s29, %s30
      %p42 = scmp.eq.s32.totalorder %s25, 7
      %p43 = por %p41, %p42
      %p45 = scmp.ne.s32.totalorder %s30, %s44
      %p46 = scmp.eq.s32.totalorder %s25, 0
      %p47 = por %p45, %p46
      %s48 = ssub.s32 %s19, %s26
      %p49 = scmp.eq.s32.totalorder %s48, 0
      %s51 = sadd.s32 %s50, 1
      %s52 = scalar_select %p49, %s50, %s51
      %p55 = pneg %p49
      %p56 = scmp.eq.s32.totalorder %s19, 7
      %p57 = por %p55, %p56
      %p58 = scmp.ne.s32.totalorder %s50, %s53
      %p59 = scmp.eq.s32.totalorder %s19, 0
      %p60 = por %p58, %p59
      %p61 = scmp.ne.s32.totalorder %s50, %s53
      %p62 = scmp.eq.s32.totalorder %s24, 7
      %p63 = por %p61, %p62
      %p64 = scmp.ne.s32.totalorder %s53, %s54
      %p65 = scmp.eq.s32.totalorder %s24, 0
      %p66 = por %p64, %p65
      %p67 = scmp.ne.s32.totalorder %s53, %s54
      %p68 = scmp.eq.s32.totalorder %s25, 7
      %p69 = por %p67, %p68
      %p71 = scmp.ne.s32.totalorder %s54, %s70
      %p72 = scmp.eq.s32.totalorder %s25, 0
      %p73 = por %p71, %p72
      %s74 = ssub.s32 %s19, %s26
      %p75 = scmp.eq.s32.totalorder %s74, 0
      %s77 = sadd.s32 %s76, 1
      %s78 = scalar_select %p75, %s76, %s77
      %p81 = pneg %p75
      %p82 = scmp.eq.s32.totalorder %s19, 7
      %p83 = por %p81, %p82
      %p84 = scmp.ne.s32.totalorder %s76, %s79
      %p85 = scmp.eq.s32.totalorder %s19, 0
      %p86 = por %p84, %p85
      %p87 = scmp.ne.s32.totalorder %s76, %s79
      %p88 = scmp.eq.s32.totalorder %s24, 7
      %p89 = por %p87, %p88
      %p90 = scmp.ne.s32.totalorder %s79, %s80
      %p91 = scmp.eq.s32.totalorder %s24, 0
      %p92 = por %p90, %p91
      %p93 = scmp.ne.s32.totalorder %s79, %s80
      %p94 = scmp.eq.s32.totalorder %s25, 7
      %p95 = por %p93, %p94
      %p97 = scmp.ne.s32.totalorder %s80, %s96
      %p98 = scmp.eq.s32.totalorder %s25, 0
      %p99 = por %p97, %p98
      %s100 = ssub.s32 %s19, %s26
      %p101 = scmp.eq.s32.totalorder %s100, 0
      %s103 = sadd.s32 %s102, 1
      %s104 = scalar_select %p101, %s102, %s103
      %p107 = pneg %p101
      %p108 = scmp.eq.s32.totalorder %s19, 7
      %p109 = por %p107, %p108
      %p110 = scmp.ne.s32.totalorder %s102, %s105
      %p111 = scmp.eq.s32.totalorder %s19, 0
      %p112 = por %p110, %p111
      %p113 = scmp.ne.s32.totalorder %s102, %s105
      %p114 = scmp.eq.s32.totalorder %s24, 7
      %p115 = por %p113, %p114
      %p116 = scmp.ne.s32.totalorder %s105, %s106
      %p117 = scmp.eq.s32.totalorder %s24, 0
      %p118 = por %p116, %p117
      %p119 = scmp.ne.s32.totalorder %s105, %s106
      %p120 = scmp.eq.s32.totalorder %s25, 7
      %p121 = por %p119, %p120
      %p123 = scmp.ne.s32.totalorder %s106, %s122
      %p124 = scmp.eq.s32.totalorder %s25, 0
      %p125 = por %p123, %p124
      %p126 = scmp.le.s32.totalorder 1, %s19
      %p127 = scmp.lt.s32.totalorder %s19, 9
      %p128 = pnand %p126, %p127
      %p129 = pneg %p128
      // Predicated region
      $region9: #{tpu_custom_call.1} parent=5 // pred_check
        _
      $region10: #{tpu_custom_call.1} parent=5 // pred_check_branch
        %131 = sbr.rel (%p128) target = $region12
      $region11: #{tpu_custom_call.1} parent=5 // pred_region
        %s132 = ssub.s32 %s19, 1
        // Predicated region
        $region13: #{tpu_custom_call.1} parent=11 // pred_check
          %p133 = pneg %p40
        $region14: #{tpu_custom_call.1} parent=11 // pred_check_branch
          %135 = sbr.rel (%p133) target = $region16
        $region15: #{tpu_custom_call.1} parent=11 // pred_region
          _
        $region16: #{tpu_custom_call.1} parent=11 // pred_fallthru
          _
      $region12: #{tpu_custom_call.1} parent=5 // pred_fallthru
        _
      %p136 = scmp.lt.s32.totalorder %s19, 8
      // Predicated region
      $region17: #{tpu_custom_call.1} parent=5 // pred_check
        %p137 = pneg %p136
      $region18: #{tpu_custom_call.1} parent=5 // pred_check_branch
        %139 = sbr.rel (%p137) target = $region20
      $region19: #{tpu_custom_call.1} parent=5 // pred_region
        // Predicated region
        $region21: #{tpu_custom_call.1} parent=19 // pred_check
          %p140 = pneg %p60
        $region22: #{tpu_custom_call.1} parent=19 // pred_check_branch
          %142 = sbr.rel (%p140) target = $region24
        $region23: #{tpu_custom_call.1} parent=19 // pred_region
          %s143 = sand.u32 %s50, 1
          %s144 = scalar_lea.sflag [#allocation4], %s143
          %s145 = sand.u32 %s50, 1
          %s146 = smul.addr %s145, 576
          %s147 = scalar_lea.vmem [#allocation3], %s146
          %s148 = smul.u32 18, %s19
          %s150 = ssub.s32 9216, 9216
          %151 = vsyncadd %s144, %s150
          %s152 = smul.addr %s148, 4
          %s153 = smul.addr %s152, 128
          %s154 = scalar_lea.hbm %s1, %s153
          %s155 = sshll.u32 %s147, 4
          %s156 = int_to_ptr.vmem [resolvable:$true] %s155
          %161 = dma.hbm_to_vmem [thread:$0]  %s154, 9216, %s156, %s144, 512, 512, 32
        $region24: #{tpu_custom_call.1} parent=19 // pred_fallthru
          _
        // Predicated region
        $region25: #{tpu_custom_call.1} parent=19 // pred_check
          %p162 = pneg %p86
        $region26: #{tpu_custom_call.1} parent=19 // pred_check_branch
          %164 = sbr.rel (%p162) target = $region28
        $region27: #{tpu_custom_call.1} parent=19 // pred_region
          %s165 = sand.u32 %s76, 1
          %s166 = scalar_lea.sflag [#allocation7], %s165
          %s167 = sand.u32 %s76, 1
          %s168 = smul.addr %s167, 576
          %s169 = scalar_lea.vmem [#allocation6], %s168
          %s170 = smul.u32 18, %s19
          %s172 = ssub.s32 9216, 9216
          %173 = vsyncadd %s166, %s172
          %s174 = smul.addr %s170, 4
          %s175 = smul.addr %s174, 128
          %s176 = scalar_lea.hbm %s2, %s175
          %s177 = sshll.u32 %s169, 4
          %s178 = int_to_ptr.vmem [resolvable:$true] %s177
          %183 = dma.hbm_to_vmem [thread:$0]  %s176, 9216, %s178, %s166, 512, 512, 32
        $region28: #{tpu_custom_call.1} parent=19 // pred_fallthru
          _
      $region20: #{tpu_custom_call.1} parent=5 // pred_fallthru
        _
      %p184 = scmp.le.s32.totalorder 1, %s19
      %p185 = scmp.lt.s32.totalorder %s19, 9
      %p186 = pnand %p184, %p185
      %p187 = pneg %p186
      // Predicated region
      $region29: #{tpu_custom_call.1} parent=5 // pred_check
        _
      $region30: #{tpu_custom_call.1} parent=5 // pred_check_branch
        %189 = sbr.rel (%p186) target = $region32
      $region31: #{tpu_custom_call.1} parent=5 // pred_region
        %s190 = ssub.s32 %s19, 1
        %s191 = sand.u32 %s53, 1
        %s192 = scalar_lea.sflag [#allocation4], %s191
        %s193 = sand.u32 %s53, 1
        %s194 = smul.addr %s193, 576
        %s195 = scalar_lea.vmem [#allocation3], %s194
        // Predicated region
        $region33: #{tpu_custom_call.1} parent=31 // pred_check
          %p196 = pneg %p66
        $region34: #{tpu_custom_call.1} parent=31 // pred_check_branch
          %198 = sbr.rel (%p196) target = $region36
        $region35: #{tpu_custom_call.1} parent=31 // pred_region
          %199 = dma.done %s192, 9216
        $region36: #{tpu_custom_call.1} parent=31 // pred_fallthru
          _
        %s200 = sand.u32 %s79, 1
        %s201 = scalar_lea.sflag [#allocation7], %s200
        %s202 = sand.u32 %s79, 1
        %s203 = smul.addr %s202, 576
        %s204 = scalar_lea.vmem [#allocation6], %s203
        // Predicated region
        $region37: #{tpu_custom_call.1} parent=31 // pred_check
          %p205 = pneg %p92
        $region38: #{tpu_custom_call.1} parent=31 // pred_check_branch
          %207 = sbr.rel (%p205) target = $region40
        $region39: #{tpu_custom_call.1} parent=31 // pred_region
          %208 = dma.done %s201, 9216
        $region40: #{tpu_custom_call.1} parent=31 // pred_fallthru
          _
        %p209 = pneg %p40
        %p210 = pneg %p37
        %s211 = sand.u32 %s53, 1
        %s212 = scalar_lea.sflag [#allocation4], %s211
        %s213 = sand.u32 %s53, 1
        %s214 = smul.addr %s213, 576
        %s215 = scalar_lea.vmem [#allocation3], %s214
        %p216 = pneg %p66
        %p217 = pneg %p63
        %s218 = sand.u32 %s79, 1
        %s219 = scalar_lea.sflag [#allocation7], %s218
        %s220 = sand.u32 %s79, 1
        %s221 = smul.addr %s220, 576
        %s222 = scalar_lea.vmem [#allocation6], %s221
        %p223 = pneg %p92
        %p224 = pneg %p89
        %p225 = pneg %p118
        %p226 = pneg %p115
        %s227 = sand.u32 %s105, 1
        %s228 = scalar_lea.sflag [#allocation5], %s227
        %s229 = sand.u32 %s105, 1
        %s230 = smul.addr %s229, 576
        %s231 = scalar_lea.vmem [#allocation8], %s230
        %s232 = smul.u32 18, %s24
        %s233 = smul.u32 18, %s24
        %s234 = smul.u32 18, %s24
        %s235 = sld [smem:[#allocation2]]
        %v236 = vld [vmem:[%s195] sm:$0xff]
        %v237 = vld [vmem:[%s195 + $0x8] sm:$0xff]
        %v238 = vld [vmem:[%s195 + $0x10] sm:$0xff]
        %v239 = vld [vmem:[%s195 + $0x18] sm:$0xff]
        %v240 = vld [vmem:[%s195 + $0x20] sm:$0xff]
        %v241 = vld [vmem:[%s195 + $0x28] sm:$0xff]
        %v242 = vld [vmem:[%s195 + $0x30] sm:$0xff]
        %v243 = vld [vmem:[%s195 + $0x38] sm:$0xff]
        %v244 = vld [vmem:[%s195 + $0x40] sm:$0xff]
        %v245 = vld [vmem:[%s195 + $0x48] sm:$0xff]
        %v246 = vld [vmem:[%s195 + $0x50] sm:$0xff]
        %v247 = vld [vmem:[%s195 + $0x58] sm:$0xff]
        %v248 = vld [vmem:[%s195 + $0x60] sm:$0xff]
        %v249 = vld [vmem:[%s195 + $0x68] sm:$0xff]
        %v250 = vld [vmem:[%s195 + $0x70] sm:$0xff]
        %v251 = vld [vmem:[%s195 + $0x78] sm:$0xff]
        %v252 = vld [vmem:[%s195 + $0x80] sm:$0xff]
        %v253 = vld [vmem:[%s195 + $0x88] sm:$0xff]
        %v254 = vld [vmem:[%s195 + $0x90] sm:$0xff]
        %v255 = vld [vmem:[%s195 + $0x98] sm:$0xff]
        %v256 = vld [vmem:[%s195 + $0xa0] sm:$0xff]
        %v257 = vld [vmem:[%s195 + $0xa8] sm:$0xff]
        %v258 = vld [vmem:[%s195 + $0xb0] sm:$0xff]
        %v259 = vld [vmem:[%s195 + $0xb8] sm:$0xff]
        %v260 = vld [vmem:[%s195 + $0xc0] sm:$0xff]
        %v261 = vld [vmem:[%s195 + $0xc8] sm:$0xff]
        %v262 = vld [vmem:[%s195 + $0xd0] sm:$0xff]
        %v263 = vld [vmem:[%s195 + $0xd8] sm:$0xff]
        %v264 = vld [vmem:[%s195 + $0xe0] sm:$0xff]
        %v265 = vld [vmem:[%s195 + $0xe8] sm:$0xff]
        %v266 = vld [vmem:[%s195 + $0xf0] sm:$0xff]
        %v267 = vld [vmem:[%s195 + $0xf8] sm:$0xff]
        %v268 = vld [vmem:[%s195 + $0x100] sm:$0xff]
        %v269 = vld [vmem:[%s195 + $0x108] sm:$0xff]
        %v270 = vld [vmem:[%s195 + $0x110] sm:$0xff]
        %v271 = vld [vmem:[%s195 + $0x118] sm:$0xff]
        %v272 = vld [vmem:[%s195 + $0x120] sm:$0xff]
        %v273 = vld [vmem:[%s195 + $0x128] sm:$0xff]
        %v274 = vld [vmem:[%s195 + $0x130] sm:$0xff]
        %v275 = vld [vmem:[%s195 + $0x138] sm:$0xff]
        %v276 = vld [vmem:[%s195 + $0x140] sm:$0xff]
        %v277 = vld [vmem:[%s195 + $0x148] sm:$0xff]
        %v278 = vld [vmem:[%s195 + $0x150] sm:$0xff]
        %v279 = vld [vmem:[%s195 + $0x158] sm:$0xff]
        %v280 = vld [vmem:[%s195 + $0x160] sm:$0xff]
        %v281 = vld [vmem:[%s195 + $0x168] sm:$0xff]
        %v282 = vld [vmem:[%s195 + $0x170] sm:$0xff]
        %v283 = vld [vmem:[%s195 + $0x178] sm:$0xff]
        %v284 = vld [vmem:[%s195 + $0x180] sm:$0xff]
        %v285 = vld [vmem:[%s195 + $0x188] sm:$0xff]
        %v286 = vld [vmem:[%s195 + $0x190] sm:$0xff]
        %v287 = vld [vmem:[%s195 + $0x198] sm:$0xff]
        %v288 = vld [vmem:[%s195 + $0x1a0] sm:$0xff]
        %v289 = vld [vmem:[%s195 + $0x1a8] sm:$0xff]
        %v290 = vld [vmem:[%s195 + $0x1b0] sm:$0xff]
        %v291 = vld [vmem:[%s195 + $0x1b8] sm:$0xff]
        %v292 = vld [vmem:[%s195 + $0x1c0] sm:$0xff]
        %v293 = vld [vmem:[%s195 + $0x1c8] sm:$0xff]
        %v294 = vld [vmem:[%s195 + $0x1d0] sm:$0xff]
        %v295 = vld [vmem:[%s195 + $0x1d8] sm:$0xff]
        %v296 = vld [vmem:[%s195 + $0x1e0] sm:$0xff]
        %v297 = vld [vmem:[%s195 + $0x1e8] sm:$0xff]
        %v298 = vld [vmem:[%s195 + $0x1f0] sm:$0xff]
        %v299 = vld [vmem:[%s195 + $0x1f8] sm:$0xff]
        %v300 = vld [vmem:[%s195 + $0x200] sm:$0xff]
        %v301 = vld [vmem:[%s195 + $0x208] sm:$0xff]
        %v302 = vld [vmem:[%s195 + $0x210] sm:$0xff]
        %v303 = vld [vmem:[%s195 + $0x218] sm:$0xff]
        %v304 = vld [vmem:[%s195 + $0x220] sm:$0xff]
        %v305 = vld [vmem:[%s195 + $0x228] sm:$0xff]
        %v306 = vld [vmem:[%s195 + $0x230] sm:$0xff]
        %v307 = vld [vmem:[%s195 + $0x238] sm:$0xff]
        %v308 = vld [vmem:[%s204] sm:$0xff]
        %v309 = vld [vmem:[%s204 + $0x8] sm:$0xff]
        %v310 = vld [vmem:[%s204 + $0x10] sm:$0xff]
        %v311 = vld [vmem:[%s204 + $0x18] sm:$0xff]
        %v312 = vld [vmem:[%s204 + $0x20] sm:$0xff]
        %v313 = vld [vmem:[%s204 + $0x28] sm:$0xff]
        %v314 = vld [vmem:[%s204 + $0x30] sm:$0xff]
        %v315 = vld [vmem:[%s204 + $0x38] sm:$0xff]
        %v316 = vld [vmem:[%s204 + $0x40] sm:$0xff]
        %v317 = vld [vmem:[%s204 + $0x48] sm:$0xff]
        %v318 = vld [vmem:[%s204 + $0x50] sm:$0xff]
        %v319 = vld [vmem:[%s204 + $0x58] sm:$0xff]
        %v320 = vld [vmem:[%s204 + $0x60] sm:$0xff]
        %v321 = vld [vmem:[%s204 + $0x68] sm:$0xff]
        %v322 = vld [vmem:[%s204 + $0x70] sm:$0xff]
        %v323 = vld [vmem:[%s204 + $0x78] sm:$0xff]
        %v324 = vld [vmem:[%s204 + $0x80] sm:$0xff]
        %v325 = vld [vmem:[%s204 + $0x88] sm:$0xff]
        %v326 = vld [vmem:[%s204 + $0x90] sm:$0xff]
        %v327 = vld [vmem:[%s204 + $0x98] sm:$0xff]
        %v328 = vld [vmem:[%s204 + $0xa0] sm:$0xff]
        %v329 = vld [vmem:[%s204 + $0xa8] sm:$0xff]
        %v330 = vld [vmem:[%s204 + $0xb0] sm:$0xff]
        %v331 = vld [vmem:[%s204 + $0xb8] sm:$0xff]
        %v332 = vld [vmem:[%s204 + $0xc0] sm:$0xff]
        %v333 = vld [vmem:[%s204 + $0xc8] sm:$0xff]
        %v334 = vld [vmem:[%s204 + $0xd0] sm:$0xff]
        %v335 = vld [vmem:[%s204 + $0xd8] sm:$0xff]
        %v336 = vld [vmem:[%s204 + $0xe0] sm:$0xff]
        %v337 = vld [vmem:[%s204 + $0xe8] sm:$0xff]
        %v338 = vld [vmem:[%s204 + $0xf0] sm:$0xff]
        %v339 = vld [vmem:[%s204 + $0xf8] sm:$0xff]
        %v340 = vld [vmem:[%s204 + $0x100] sm:$0xff]
        %v341 = vld [vmem:[%s204 + $0x108] sm:$0xff]
        %v342 = vld [vmem:[%s204 + $0x110] sm:$0xff]
        %v343 = vld [vmem:[%s204 + $0x118] sm:$0xff]
        %v344 = vld [vmem:[%s204 + $0x120] sm:$0xff]
        %v345 = vld [vmem:[%s204 + $0x128] sm:$0xff]
        %v346 = vld [vmem:[%s204 + $0x130] sm:$0xff]
        %v347 = vld [vmem:[%s204 + $0x138] sm:$0xff]
        %v348 = vld [vmem:[%s204 + $0x140] sm:$0xff]
        %v349 = vld [vmem:[%s204 + $0x148] sm:$0xff]
        %v350 = vld [vmem:[%s204 + $0x150] sm:$0xff]
        %v351 = vld [vmem:[%s204 + $0x158] sm:$0xff]
        %v352 = vld [vmem:[%s204 + $0x160] sm:$0xff]
        %v353 = vld [vmem:[%s204 + $0x168] sm:$0xff]
        %v354 = vld [vmem:[%s204 + $0x170] sm:$0xff]
        %v355 = vld [vmem:[%s204 + $0x178] sm:$0xff]
        %v356 = vld [vmem:[%s204 + $0x180] sm:$0xff]
        %v357 = vld [vmem:[%s204 + $0x188] sm:$0xff]
        %v358 = vld [vmem:[%s204 + $0x190] sm:$0xff]
        %v359 = vld [vmem:[%s204 + $0x198] sm:$0xff]
        %v360 = vld [vmem:[%s204 + $0x1a0] sm:$0xff]
        %v361 = vld [vmem:[%s204 + $0x1a8] sm:$0xff]
        %v362 = vld [vmem:[%s204 + $0x1b0] sm:$0xff]
        %v363 = vld [vmem:[%s204 + $0x1b8] sm:$0xff]
        %v364 = vld [vmem:[%s204 + $0x1c0] sm:$0xff]
        %v365 = vld [vmem:[%s204 + $0x1c8] sm:$0xff]
        %v366 = vld [vmem:[%s204 + $0x1d0] sm:$0xff]
        %v367 = vld [vmem:[%s204 + $0x1d8] sm:$0xff]
        %v368 = vld [vmem:[%s204 + $0x1e0] sm:$0xff]
        %v369 = vld [vmem:[%s204 + $0x1e8] sm:$0xff]
        %v370 = vld [vmem:[%s204 + $0x1f0] sm:$0xff]
        %v371 = vld [vmem:[%s204 + $0x1f8] sm:$0xff]
        %v372 = vld [vmem:[%s204 + $0x200] sm:$0xff]
        %v373 = vld [vmem:[%s204 + $0x208] sm:$0xff]
        %v374 = vld [vmem:[%s204 + $0x210] sm:$0xff]
        %v375 = vld [vmem:[%s204 + $0x218] sm:$0xff]
        %v376 = vld [vmem:[%s204 + $0x220] sm:$0xff]
        %v377 = vld [vmem:[%s204 + $0x228] sm:$0xff]
        %v378 = vld [vmem:[%s204 + $0x230] sm:$0xff]
        %v379 = vld [vmem:[%s204 + $0x238] sm:$0xff]
        %v380 = vstv %s235
        %v381 = vmul.f32 %v308, %v380
        %v382 = vmul.f32 %v309, %v380
        %v383 = vmul.f32 %v310, %v380
        %v384 = vmul.f32 %v311, %v380
        %v385 = vmul.f32 %v312, %v380
        %v386 = vmul.f32 %v313, %v380
        %v387 = vmul.f32 %v314, %v380
        %v388 = vmul.f32 %v315, %v380
        %v389 = vmul.f32 %v316, %v380
        %v390 = vmul.f32 %v317, %v380
        %v391 = vmul.f32 %v318, %v380
        %v392 = vmul.f32 %v319, %v380
        %v393 = vmul.f32 %v320, %v380
        %v394 = vmul.f32 %v321, %v380
        %v395 = vmul.f32 %v322, %v380
        %v396 = vmul.f32 %v323, %v380
        %v397 = vmul.f32 %v324, %v380
        %v398 = vmul.f32 %v325, %v380
        %v399 = vmul.f32 %v326, %v380
        %v400 = vmul.f32 %v327, %v380
        %v401 = vmul.f32 %v328, %v380
        %v402 = vmul.f32 %v329, %v380
        %v403 = vmul.f32 %v330, %v380
        %v404 = vmul.f32 %v331, %v380
        %v405 = vmul.f32 %v332, %v380
        %v406 = vmul.f32 %v333, %v380
        %v407 = vmul.f32 %v334, %v380
        %v408 = vmul.f32 %v335, %v380
        %v409 = vmul.f32 %v336, %v380
        %v410 = vmul.f32 %v337, %v380
        %v411 = vmul.f32 %v338, %v380
        %v412 = vmul.f32 %v339, %v380
        %v413 = vmul.f32 %v340, %v380
        %v414 = vmul.f32 %v341, %v380
        %v415 = vmul.f32 %v342, %v380
        %v416 = vmul.f32 %v343, %v380
        %v417 = vmul.f32 %v344, %v380
        %v418 = vmul.f32 %v345, %v380
        %v419 = vmul.f32 %v346, %v380
        %v420 = vmul.f32 %v347, %v380
        %v421 = vmul.f32 %v348, %v380
        %v422 = vmul.f32 %v349, %v380
        %v423 = vmul.f32 %v350, %v380
        %v424 = vmul.f32 %v351, %v380
        %v425 = vmul.f32 %v352, %v380
        %v426 = vmul.f32 %v353, %v380
        %v427 = vmul.f32 %v354, %v380
        %v428 = vmul.f32 %v355, %v380
        %v429 = vmul.f32 %v356, %v380
        %v430 = vmul.f32 %v357, %v380
        %v431 = vmul.f32 %v358, %v380
        %v432 = vmul.f32 %v359, %v380
        %v433 = vmul.f32 %v360, %v380
        %v434 = vmul.f32 %v361, %v380
        %v435 = vmul.f32 %v362, %v380
        %v436 = vmul.f32 %v363, %v380
        %v437 = vmul.f32 %v364, %v380
        %v438 = vmul.f32 %v365, %v380
        %v439 = vmul.f32 %v366, %v380
        %v440 = vmul.f32 %v367, %v380
        %v441 = vmul.f32 %v368, %v380
        %v442 = vmul.f32 %v369, %v380
        %v443 = vmul.f32 %v370, %v380
        %v444 = vmul.f32 %v371, %v380
        %v445 = vmul.f32 %v372, %v380
        %v446 = vmul.f32 %v373, %v380
        %v447 = vmul.f32 %v374, %v380
        %v448 = vmul.f32 %v375, %v380
        %v449 = vmul.f32 %v376, %v380
        %v450 = vmul.f32 %v377, %v380
        %v451 = vmul.f32 %v378, %v380
        %v452 = vmul.f32 %v379, %v380
        %v453 = vadd.f32 %v236, %v381
        %v454 = vadd.f32 %v237, %v382
        %v455 = vadd.f32 %v238, %v383
        %v456 = vadd.f32 %v239, %v384
        %v457 = vadd.f32 %v240, %v385
        %v458 = vadd.f32 %v241, %v386
        %v459 = vadd.f32 %v242, %v387
        %v460 = vadd.f32 %v243, %v388
        %v461 = vadd.f32 %v244, %v389
        %v462 = vadd.f32 %v245, %v390
        %v463 = vadd.f32 %v246, %v391
        %v464 = vadd.f32 %v247, %v392
        %v465 = vadd.f32 %v248, %v393
        %v466 = vadd.f32 %v249, %v394
        %v467 = vadd.f32 %v250, %v395
        %v468 = vadd.f32 %v251, %v396
        %v469 = vadd.f32 %v252, %v397
        %v470 = vadd.f32 %v253, %v398
        %v471 = vadd.f32 %v254, %v399
        %v472 = vadd.f32 %v255, %v400
        %v473 = vadd.f32 %v256, %v401
        %v474 = vadd.f32 %v257, %v402
        %v475 = vadd.f32 %v258, %v403
        %v476 = vadd.f32 %v259, %v404
        %v477 = vadd.f32 %v260, %v405
        %v478 = vadd.f32 %v261, %v406
        %v479 = vadd.f32 %v262, %v407
        %v480 = vadd.f32 %v263, %v408
        %v481 = vadd.f32 %v264, %v409
        %v482 = vadd.f32 %v265, %v410
        %v483 = vadd.f32 %v266, %v411
        %v484 = vadd.f32 %v267, %v412
        %v485 = vadd.f32 %v268, %v413
        %v486 = vadd.f32 %v269, %v414
        %v487 = vadd.f32 %v270, %v415
        %v488 = vadd.f32 %v271, %v416
        %v489 = vadd.f32 %v272, %v417
        %v490 = vadd.f32 %v273, %v418
        %v491 = vadd.f32 %v274, %v419
        %v492 = vadd.f32 %v275, %v420
        %v493 = vadd.f32 %v276, %v421
        %v494 = vadd.f32 %v277, %v422
        %v495 = vadd.f32 %v278, %v423
        %v496 = vadd.f32 %v279, %v424
        %v497 = vadd.f32 %v280, %v425
        %v498 = vadd.f32 %v281, %v426
        %v499 = vadd.f32 %v282, %v427
        %v500 = vadd.f32 %v283, %v428
        %v501 = vadd.f32 %v284, %v429
        %v502 = vadd.f32 %v285, %v430
        %v503 = vadd.f32 %v286, %v431
        %v504 = vadd.f32 %v287, %v432
        %v505 = vadd.f32 %v288, %v433
        %v506 = vadd.f32 %v289, %v434
        %v507 = vadd.f32 %v290, %v435
        %v508 = vadd.f32 %v291, %v436
        %v509 = vadd.f32 %v292, %v437
        %v510 = vadd.f32 %v293, %v438
        %v511 = vadd.f32 %v294, %v439
        %v512 = vadd.f32 %v295, %v440
        %v513 = vadd.f32 %v296, %v441
        %v514 = vadd.f32 %v297, %v442
        %v515 = vadd.f32 %v298, %v443
        %v516 = vadd.f32 %v299, %v444
        %v517 = vadd.f32 %v300, %v445
        %v518 = vadd.f32 %v301, %v446
        %v519 = vadd.f32 %v302, %v447
        %v520 = vadd.f32 %v303, %v448
        %v521 = vadd.f32 %v304, %v449
        %v522 = vadd.f32 %v305, %v450
        %v523 = vadd.f32 %v306, %v451
        %v524 = vadd.f32 %v307, %v452
        %525 = vst [vmem:[%s231] sm:$0xff] %v453
        %526 = vst [vmem:[%s231 + $0x8] sm:$0xff] %v454
        %527 = vst [vmem:[%s231 + $0x10] sm:$0xff] %v455
        %528 = vst [vmem:[%s231 + $0x18] sm:$0xff] %v456
        %529 = vst [vmem:[%s231 + $0x20] sm:$0xff] %v457
        %530 = vst [vmem:[%s231 + $0x28] sm:$0xff] %v458
        %531 = vst [vmem:[%s231 + $0x30] sm:$0xff] %v459
        %532 = vst [vmem:[%s231 + $0x38] sm:$0xff] %v460
        %533 = vst [vmem:[%s231 + $0x40] sm:$0xff] %v461
        %534 = vst [vmem:[%s231 + $0x48] sm:$0xff] %v462
        %535 = vst [vmem:[%s231 + $0x50] sm:$0xff] %v463
        %536 = vst [vmem:[%s231 + $0x58] sm:$0xff] %v464
        %537 = vst [vmem:[%s231 + $0x60] sm:$0xff] %v465
        %538 = vst [vmem:[%s231 + $0x68] sm:$0xff] %v466
        %539 = vst [vmem:[%s231 + $0x70] sm:$0xff] %v467
        %540 = vst [vmem:[%s231 + $0x78] sm:$0xff] %v468
        %541 = vst [vmem:[%s231 + $0x80] sm:$0xff] %v469
        %542 = vst [vmem:[%s231 + $0x88] sm:$0xff] %v470
        %543 = vst [vmem:[%s231 + $0x90] sm:$0xff] %v471
        %544 = vst [vmem:[%s231 + $0x98] sm:$0xff] %v472
        %545 = vst [vmem:[%s231 + $0xa0] sm:$0xff] %v473
        %546 = vst [vmem:[%s231 + $0xa8] sm:$0xff] %v474
        %547 = vst [vmem:[%s231 + $0xb0] sm:$0xff] %v475
        %548 = vst [vmem:[%s231 + $0xb8] sm:$0xff] %v476
        %549 = vst [vmem:[%s231 + $0xc0] sm:$0xff] %v477
        %550 = vst [vmem:[%s231 + $0xc8] sm:$0xff] %v478
        %551 = vst [vmem:[%s231 + $0xd0] sm:$0xff] %v479
        %552 = vst [vmem:[%s231 + $0xd8] sm:$0xff] %v480
        %553 = vst [vmem:[%s231 + $0xe0] sm:$0xff] %v481
        %554 = vst [vmem:[%s231 + $0xe8] sm:$0xff] %v482
        %555 = vst [vmem:[%s231 + $0xf0] sm:$0xff] %v483
        %556 = vst [vmem:[%s231 + $0xf8] sm:$0xff] %v484
        %557 = vst [vmem:[%s231 + $0x100] sm:$0xff] %v485
        %558 = vst [vmem:[%s231 + $0x108] sm:$0xff] %v486
        %559 = vst [vmem:[%s231 + $0x110] sm:$0xff] %v487
        %560 = vst [vmem:[%s231 + $0x118] sm:$0xff] %v488
        %561 = vst [vmem:[%s231 + $0x120] sm:$0xff] %v489
        %562 = vst [vmem:[%s231 + $0x128] sm:$0xff] %v490
        %563 = vst [vmem:[%s231 + $0x130] sm:$0xff] %v491
        %564 = vst [vmem:[%s231 + $0x138] sm:$0xff] %v492
        %565 = vst [vmem:[%s231 + $0x140] sm:$0xff] %v493
        %566 = vst [vmem:[%s231 + $0x148] sm:$0xff] %v494
        %567 = vst [vmem:[%s231 + $0x150] sm:$0xff] %v495
        %568 = vst [vmem:[%s231 + $0x158] sm:$0xff] %v496
        %569 = vst [vmem:[%s231 + $0x160] sm:$0xff] %v497
        %570 = vst [vmem:[%s231 + $0x168] sm:$0xff] %v498
        %571 = vst [vmem:[%s231 + $0x170] sm:$0xff] %v499
        %572 = vst [vmem:[%s231 + $0x178] sm:$0xff] %v500
        %573 = vst [vmem:[%s231 + $0x180] sm:$0xff] %v501
        %574 = vst [vmem:[%s231 + $0x188] sm:$0xff] %v502
        %575 = vst [vmem:[%s231 + $0x190] sm:$0xff] %v503
        %576 = vst [vmem:[%s231 + $0x198] sm:$0xff] %v504
        %577 = vst [vmem:[%s231 + $0x1a0] sm:$0xff] %v505
        %578 = vst [vmem:[%s231 + $0x1a8] sm:$0xff] %v506
        %579 = vst [vmem:[%s231 + $0x1b0] sm:$0xff] %v507
        %580 = vst [vmem:[%s231 + $0x1b8] sm:$0xff] %v508
        %581 = vst [vmem:[%s231 + $0x1c0] sm:$0xff] %v509
        %582 = vst [vmem:[%s231 + $0x1c8] sm:$0xff] %v510
        %583 = vst [vmem:[%s231 + $0x1d0] sm:$0xff] %v511
        %584 = vst [vmem:[%s231 + $0x1d8] sm:$0xff] %v512
        %585 = vst [vmem:[%s231 + $0x1e0] sm:$0xff] %v513
        %586 = vst [vmem:[%s231 + $0x1e8] sm:$0xff] %v514
        %587 = vst [vmem:[%s231 + $0x1f0] sm:$0xff] %v515
        %588 = vst [vmem:[%s231 + $0x1f8] sm:$0xff] %v516
        %589 = vst [vmem:[%s231 + $0x200] sm:$0xff] %v517
        %590 = vst [vmem:[%s231 + $0x208] sm:$0xff] %v518
        %591 = vst [vmem:[%s231 + $0x210] sm:$0xff] %v519
        %592 = vst [vmem:[%s231 + $0x218] sm:$0xff] %v520
        %593 = vst [vmem:[%s231 + $0x220] sm:$0xff] %v521
        %594 = vst [vmem:[%s231 + $0x228] sm:$0xff] %v522
        %595 = vst [vmem:[%s231 + $0x230] sm:$0xff] %v523
        %596 = vst [vmem:[%s231 + $0x238] sm:$0xff] %v524
        %s597 = sand.u32 %s105, 1
        %s598 = scalar_lea.sflag [#allocation5], %s597
        %s599 = sand.u32 %s105, 1
        %s600 = smul.addr %s599, 576
        %s601 = scalar_lea.vmem [#allocation8], %s600
        // Predicated region
        $region41: #{tpu_custom_call.1} parent=31 // pred_check
          %p602 = pneg %p115
        $region42: #{tpu_custom_call.1} parent=31 // pred_check_branch
          %604 = sbr.rel (%p602) target = $region44
        $region43: #{tpu_custom_call.1} parent=31 // pred_region
          %s605 = smul.u32 18, %s24
          %s607 = ssub.s32 9216, 9216
          %608 = vsyncadd %s598, %s607
          %s609 = smul.addr %s605, 4
          %s610 = smul.addr %s609, 128
          %s611 = scalar_lea.hbm %s3, %s610
          %s612 = sshll.u32 %s601, 4
          %s613 = int_to_ptr.vmem [resolvable:$true] %s612
          %618 = dma.vmem_to_hbm [thread:$0]  %s613, 9216, %s611, %s598, 512, 512, 32
        $region44: #{tpu_custom_call.1} parent=31 // pred_fallthru
          _
      $region32: #{tpu_custom_call.1} parent=5 // pred_fallthru
        _
      %p619 = scmp.le.s32.totalorder 2, %s19
      // Predicated region
      $region45: #{tpu_custom_call.1} parent=5 // pred_check
        %p620 = pneg %p619
      $region46: #{tpu_custom_call.1} parent=5 // pred_check_branch
        %622 = sbr.rel (%p620) target = $region48
      $region47: #{tpu_custom_call.1} parent=5 // pred_region
        %s623 = ssub.s32 %s19, 2
        // Predicated region
        $region49: #{tpu_custom_call.1} parent=47 // pred_check
          %p624 = pneg %p121
        $region50: #{tpu_custom_call.1} parent=47 // pred_check_branch
          %626 = sbr.rel (%p624) target = $region52
        $region51: #{tpu_custom_call.1} parent=47 // pred_region
          %s627 = sand.u32 %s106, 1
          %s628 = scalar_lea.sflag [#allocation5], %s627
          %s629 = sand.u32 %s106, 1
          %s630 = smul.addr %s629, 576
          %s631 = scalar_lea.vmem [#allocation8], %s630
          %632 = dma.done %s628, 9216
        $region52: #{tpu_custom_call.1} parent=47 // pred_fallthru
          _
      $region48: #{tpu_custom_call.1} parent=5 // pred_fallthru
        _
    $region6: #{tpu_custom_call.1} parent=1 // loop_footer
      %s23 = sadd.s32 1, %s19
    $region7: #{tpu_custom_call.1} parent=1 // loop_footer_branch
      %18 = sbr.rel target = $region3
    $region8: #{tpu_custom_call.1} parent=1 // loop_exit
      _
    %633 = vsyncpa [#allocation4], 1
    %s634 = scalar_lea.sflag [#allocation4], 1
    %635 = vsyncpa %s634, 1
    %636 = vsyncpa [#allocation7], 1
    %s637 = scalar_lea.sflag [#allocation7], 1
    %638 = vsyncpa %s637, 1
    %639 = vsyncpa [#allocation5], 1
    %s640 = scalar_lea.sflag [#allocation5], 1
    %641 = vsyncpa %s640, 1

</llo_original>
